<compile_context>
chip_gen: v7x
topology: tpu7x:2x2x1
jax: 0.10.0
libtpu: 0.0.40
codegen_flags: <defaults>
</compile_context>

<pallas_src>
import functools

import jax
import jax.numpy as jnp
from jax.experimental import pallas as pl
from jax.experimental.pallas import tpu as pltpu

N_FLOORS = 20
N_ACTIONS = N_FLOORS
HIDDEN = 100

LANE = 128  # last-dim tiling unit


def _round_up(n, m):
    return (n + m - 1) // m * m


def _pad2d(a, rows, cols):
    r, c = a.shape
    return jnp.pad(a, ((0, rows - r), (0, cols - c)))


def dqn_kernel(x_ref, w1_ref, b1_ref, w2_ref, b2_ref, w3_ref, b3_ref, o_ref):
    x = x_ref[...]
    # hidden1 + ReLU  (K = natural input width; Mosaic masks the ragged tile)
    h1 = jnp.dot(x, w1_ref[...], preferred_element_type=jnp.float32) + b1_ref[...]
    h1 = jnp.maximum(h1, 0.0)
    # hidden2 + ReLU
    h2 = jnp.dot(h1.astype(w2_ref.dtype), w2_ref[...],
                 preferred_element_type=jnp.float32) + b2_ref[...]
    h2 = jnp.maximum(h2, 0.0)
    # output + negated ReLU   (x = -F.relu(self.output(x)))
    q = jnp.dot(h2.astype(w3_ref.dtype), w3_ref[...],
                preferred_element_type=jnp.float32) + b3_ref[...]
    o_ref[...] = (-jnp.maximum(q, 0.0)).astype(o_ref.dtype)


def prepare_params(w1, b1, w2, b2, w3, b3, compute_dtype=jnp.float32):
    """Pad hidden dims to 128 lanes and cast weights ONCE (hoisted out of the
    per-forward path).  Zero padding is exact: padded hidden units get zero
    weights + zero bias, stay 0 through ReLU, and contribute nothing downstream.
    The action dim stays at its natural width (no padded output columns)."""
    d_in, h1 = w1.shape
    h2 = w2.shape[1]
    n_out = w3.shape[1]
    h1_p = _round_up(h1, LANE)
    h2_p = _round_up(h2, LANE)
    w1p = _pad2d(w1, d_in, h1_p).astype(compute_dtype)    # (d_in, 128)
    w2p = _pad2d(w2, h1_p, h2_p).astype(compute_dtype)    # (128, 128)
    w3p = _pad2d(w3, h2_p, n_out).astype(compute_dtype)   # (128, n_actions)
    b1p = _pad2d(b1.reshape(1, -1), 1, h1_p).astype(jnp.float32)
    b2p = _pad2d(b2.reshape(1, -1), 1, h2_p).astype(jnp.float32)
    b3p = b3.reshape(1, -1).astype(jnp.float32)            # (1, n_actions)
    return (w1p, b1p, w2p, b2p, w3p, b3p)


@functools.partial(jax.jit, static_argnames=("block_b",))
def dqn_forward(x, params, *, block_b=4096):
    """x: (B, input_size) at natural width; params from prepare_params()."""
    w1p, b1p, w2p, b2p, w3p, b3p = params
    B, d_in = x.shape
    n_out = w3p.shape[1]
    compute_dtype = w1p.dtype
    itemsize = jnp.dtype(compute_dtype).itemsize

    # Second-minor tiling unit for the compute dtype (8 for f32, 16 for bf16).
    sub = max(8, 32 // itemsize)

    # Batch tile: big enough to amortize the ~0.35us per-step overhead, but
    # always >= 2 grid steps for large B so the "parallel" batch axis can be
    # sharded across both v7x TensorCores (no-op on single-TC v5e/v6e).
    tb = min(block_b, _round_up(pl.cdiv(B, 2), sub))
    b_p = _round_up(B, tb)

    xp = x
    if b_p != B:
        # Zero-pad extra batch rows; their (garbage) Q rows are sliced off
        # below and never reach the caller.
        xp = jnp.pad(xp, ((0, b_p - B), (0, 0)))
    xp = xp.astype(compute_dtype)  # no-op in the f32 path

    grid = (b_p // tb,)

    def const_spec(shape):  # weights/biases: same block every step -> resident
        return pl.BlockSpec(shape, lambda i: (0, 0))

    flops = 2 * b_p * (d_in * w1p.shape[1]
                       + w2p.shape[0] * w2p.shape[1]
                       + w3p.shape[0] * n_out)
    bytes_accessed = (b_p * d_in * itemsize + b_p * n_out * 4
                      + sum(int(a.size) * a.dtype.itemsize
                            for a in (w1p, b1p, w2p, b2p, w3p, b3p)))

    out = pl.pallas_call(
        dqn_kernel,
        out_shape=jax.ShapeDtypeStruct((b_p, n_out), jnp.float32),
        grid=grid,
        in_specs=[
            # x at its natural feature width (last dim == full array dim).
            pl.BlockSpec((tb, d_in), lambda i: (i, 0)),
            const_spec(w1p.shape),
            const_spec(b1p.shape),
            const_spec(w2p.shape),
            const_spec(b2p.shape),
            const_spec(w3p.shape),
            const_spec(b3p.shape),
        ],
        # Output at natural width (n_actions lanes) -> no padded-column slice.
        out_specs=pl.BlockSpec((tb, n_out), lambda i: (i, 0)),
        compiler_params=pltpu.CompilerParams(
            # Batch rows are independent -> shard grid across TCs (v7x megacore).
            dimension_semantics=("parallel",),
            # Explicit budget: double-buffered x/out blocks + (tb,128) f32
            # hidden intermediates + resident weights at block_b=4096 is ~8 MB;
            # 32 MiB gives headroom and is below physical VMEM on v5e/v6e/v7x.
            vmem_limit_bytes=32 * 1024 * 1024,
        ),
        cost_estimate=pl.CostEstimate(flops=flops, transcendentals=0,
                                      bytes_accessed=bytes_accessed),
    )(xp, w1p, b1p, w2p, b2p, w3p, b3p)

    # Drop padded batch rows (if any); the action dim is already exact.
    return out if b_p == B else out[:B]


def init_linear(key, fan_in, fan_out):
    """PyTorch nn.Linear default init: U(-1/sqrt(fan_in), 1/sqrt(fan_in))."""
    kw, kb = jax.random.split(key)
    bound = 1.0 / jnp.sqrt(fan_in)
    # stored as (in, out) so the kernel computes x @ W directly
    w = jax.random.uniform(kw, (fan_in, fan_out), jnp.float32, -bound, bound)
    b = jax.random.uniform(kb, (1, fan_out), jnp.float32, -bound, bound)
    return w, b


def reference_forward(x, w1, b1, w2, b2, w3, b3):
    h1 = jnp.maximum(x @ w1 + b1, 0.0)
    h2 = jnp.maximum(h1 @ w2 + b2, 0.0)
    return -jnp.maximum(h2 @ w3 + b3, 0.0)


if __name__ == "__main__":
    key = jax.random.PRNGKey(0)
    k_x, k1, k2, k3 = jax.random.split(key, 4)

    batch = 8
    input_size = 2 * N_FLOORS + 1  # elevator-state features (41)

    x = jax.random.normal(k_x, (batch, input_size), jnp.float32)
    w1, b1 = init_linear(k1, input_size, HIDDEN)
    w2, b2 = init_linear(k2, HIDDEN, HIDDEN)
    w3, b3 = init_linear(k3, HIDDEN, N_ACTIONS)

    ref = reference_forward(x, w1, b1, w2, b2, w3, b3)

    # --- float32 path: tight tolerance vs reference -------------------------
    params_f32 = prepare_params(w1, b1, w2, b2, w3, b3, jnp.float32)
    out = jax.block_until_ready(dqn_forward(x, params_f32))
    assert out.shape == (batch, N_ACTIONS), out.shape
    assert jnp.allclose(out, ref, atol=1e-5, rtol=1e-5), "f32 mismatch vs reference"
    assert bool(jnp.all(out <= 0.0)), "output of -ReLU must be <= 0"

    # --- bfloat16 inputs/weights (f32 accumulation): v6e/v7x fast path ------
    params_bf16 = prepare_params(w1, b1, w2, b2, w3, b3, jnp.bfloat16)
    out_bf16 = jax.block_until_ready(dqn_forward(x, params_bf16))
    assert out_bf16.shape == (batch, N_ACTIONS), out_bf16.shape
    assert bool(jnp.all(out_bf16 <= 0.0)), "bf16 output of -ReLU must be <= 0"
    assert jnp.allclose(out_bf16, ref, atol=1e-1, rtol=1e-1), "bf16 path diverged"

    # --- multi-step grid path (batch padding + >=2 parallel grid steps) -----
    big_b = 100
    x_big = jax.random.normal(k_x, (big_b, input_size), jnp.float32)
    out_big = jax.block_until_ready(dqn_forward(x_big, params_f32, block_b=32))
    ref_big = reference_forward(x_big, w1, b1, w2, b2, w3, b3)
    assert out_big.shape == (big_b, N_ACTIONS), out_big.shape
    assert jnp.allclose(out_big, ref_big, atol=1e-5, rtol=1e-5), "tiled mismatch"

    print("KERNEL_OK")
</pallas_src>

<mosaic_0001>
module attributes {stable_mosaic.version = 11 : i64} {
  func.func @dqn_kernel(%arg0: i32, %arg1: memref<8x41xf32, #tpu.memory_space<vmem>>, %arg2: memref<41x128xf32, #tpu.memory_space<vmem>>, %arg3: memref<1x128xf32, #tpu.memory_space<vmem>>, %arg4: memref<128x128xf32, #tpu.memory_space<vmem>>, %arg5: memref<1x128xf32, #tpu.memory_space<vmem>>, %arg6: memref<128x20xf32, #tpu.memory_space<vmem>>, %arg7: memref<1x20xf32, #tpu.memory_space<vmem>>, %arg8: memref<8x20xf32, #tpu.memory_space<vmem>>) attributes {dimension_semantics = [#tpu.dimension_semantics<parallel>], iteration_bounds = array<i64: 1>, scalar_prefetch = 0 : i64, scratch_operands = 0 : i64, tpu.core_type = #tpu.core_type<tc>, window_params = [{transform_indices = @transform_0, window_bounds = array<i64: 8, 41>}, {pipeline_mode = #tpu.pipeline_mode<synchronous>, transform_indices = @transform_1, window_bounds = array<i64: 41, 128>}, {pipeline_mode = #tpu.pipeline_mode<synchronous>, transform_indices = @transform_2, window_bounds = array<i64: 1, 128>}, {pipeline_mode = #tpu.pipeline_mode<synchronous>, transform_indices = @transform_3, window_bounds = array<i64: 128, 128>}, {pipeline_mode = #tpu.pipeline_mode<synchronous>, transform_indices = @transform_4, window_bounds = array<i64: 1, 128>}, {pipeline_mode = #tpu.pipeline_mode<synchronous>, transform_indices = @transform_5, window_bounds = array<i64: 128, 20>}, {pipeline_mode = #tpu.pipeline_mode<synchronous>, transform_indices = @transform_6, window_bounds = array<i64: 1, 20>}, {transform_indices = @transform_7, window_bounds = array<i64: 8, 20>}]} {
    %c0 = arith.constant 0 : index
    %c0_0 = arith.constant 0 : index
    %0 = vector.load %arg1[%c0, %c0_0] : memref<8x41xf32, #tpu.memory_space<vmem>>, vector<8x41xf32>
    %c0_1 = arith.constant 0 : index
    %c0_2 = arith.constant 0 : index
    %1 = vector.load %arg2[%c0_1, %c0_2] : memref<41x128xf32, #tpu.memory_space<vmem>>, vector<41x128xf32>
    %cst = arith.constant dense<0.000000e+00> : vector<8x128xf32>
    %2 = tpu.matmul %0, %1, %cst {dimension_numbers = #tpu.dot_dimension_numbers<[1], [0], [0], [1], [0, 0, 1, 1], [], []>} : vector<8x41xf32>, vector<41x128xf32>, vector<8x128xf32> -> vector<8x128xf32>
    %c0_3 = arith.constant 0 : index
    %c0_4 = arith.constant 0 : index
    %3 = vector.load %arg3[%c0_3, %c0_4] : memref<1x128xf32, #tpu.memory_space<vmem>>, vector<1x128xf32>
    %4 = vector.broadcast %3 : vector<1x128xf32> to vector<8x128xf32>
    %5 = arith.addf %2, %4 : vector<8x128xf32>
    %cst_5 = arith.constant 0.000000e+00 : f32
    %6 = vector.broadcast %cst_5 : f32 to vector<8x128xf32>
    %7 = arith.maximumf %5, %6 : vector<8x128xf32>
    %c0_6 = arith.constant 0 : index
    %c0_7 = arith.constant 0 : index
    %8 = vector.load %arg4[%c0_6, %c0_7] : memref<128x128xf32, #tpu.memory_space<vmem>>, vector<128x128xf32>
    %cst_8 = arith.constant dense<0.000000e+00> : vector<8x128xf32>
    %9 = tpu.matmul %7, %8, %cst_8 {dimension_numbers = #tpu.dot_dimension_numbers<[1], [0], [0], [1], [0, 0, 1, 1], [], []>} : vector<8x128xf32>, vector<128x128xf32>, vector<8x128xf32> -> vector<8x128xf32>
    %c0_9 = arith.constant 0 : index
    %c0_10 = arith.constant 0 : index
    %10 = vector.load %arg5[%c0_9, %c0_10] : memref<1x128xf32, #tpu.memory_space<vmem>>, vector<1x128xf32>
    %11 = vector.broadcast %10 : vector<1x128xf32> to vector<8x128xf32>
    %12 = arith.addf %9, %11 : vector<8x128xf32>
    %cst_11 = arith.constant 0.000000e+00 : f32
    %13 = vector.broadcast %cst_11 : f32 to vector<8x128xf32>
    %14 = arith.maximumf %12, %13 : vector<8x128xf32>
    %c0_12 = arith.constant 0 : index
    %c0_13 = arith.constant 0 : index
    %15 = vector.load %arg6[%c0_12, %c0_13] : memref<128x20xf32, #tpu.memory_space<vmem>>, vector<128x20xf32>
    %cst_14 = arith.constant dense<0.000000e+00> : vector<8x20xf32>
    %16 = tpu.matmul %14, %15, %cst_14 {dimension_numbers = #tpu.dot_dimension_numbers<[1], [0], [0], [1], [0, 0, 1, 1], [], []>} : vector<8x128xf32>, vector<128x20xf32>, vector<8x20xf32> -> vector<8x20xf32>
    %c0_15 = arith.constant 0 : index
    %c0_16 = arith.constant 0 : index
    %17 = vector.load %arg7[%c0_15, %c0_16] : memref<1x20xf32, #tpu.memory_space<vmem>>, vector<1x20xf32>
    %18 = vector.broadcast %17 : vector<1x20xf32> to vector<8x20xf32>
    %19 = arith.addf %16, %18 : vector<8x20xf32>
    %cst_17 = arith.constant 0.000000e+00 : f32
    %20 = vector.broadcast %cst_17 : f32 to vector<8x20xf32>
    %21 = arith.maximumf %19, %20 : vector<8x20xf32>
    %cst_18 = arith.constant 0.000000e+00 : f32
    %22 = vector.broadcast %cst_18 : f32 to vector<8x20xf32>
    %23 = arith.subf %22, %21 : vector<8x20xf32>
    %c0_19 = arith.constant 0 : index
    %c0_20 = arith.constant 0 : index
    %24 = vector.load %arg8[%c0_19, %c0_20] : memref<8x20xf32, #tpu.memory_space<vmem>>, vector<8x20xf32>
    tpu.vector_store %arg8[%c0_19, %c0_20], %23 {strides = array<i32>} : memref<8x20xf32, #tpu.memory_space<vmem>>, vector<8x20xf32>,
    return
  }
  func.func @transform_0(%arg0: i32) -> (i32, i32) {
    %c0_i32 = arith.constant 0 : i32
    %c0_i32_0 = arith.constant 0 : i32
    return %arg0, %c0_i32 : i32, i32
  }
  func.func @transform_1(%arg0: i32) -> (i32, i32) {
    %c0_i32 = arith.constant 0 : i32
    %c0_i32_0 = arith.constant 0 : i32
    %c0_i32_1 = arith.constant 0 : i32
    return %c0_i32, %c0_i32_0 : i32, i32
  }
  func.func @transform_2(%arg0: i32) -> (i32, i32) {
    %c0_i32 = arith.constant 0 : i32
    %c0_i32_0 = arith.constant 0 : i32
    %c0_i32_1 = arith.constant 0 : i32
    return %c0_i32, %c0_i32_0 : i32, i32
  }
  func.func @transform_3(%arg0: i32) -> (i32, i32) {
    %c0_i32 = arith.constant 0 : i32
    %c0_i32_0 = arith.constant 0 : i32
    %c0_i32_1 = arith.constant 0 : i32
    return %c0_i32, %c0_i32_0 : i32, i32
  }
  func.func @transform_4(%arg0: i32) -> (i32, i32) {
    %c0_i32 = arith.constant 0 : i32
    %c0_i32_0 = arith.constant 0 : i32
    %c0_i32_1 = arith.constant 0 : i32
    return %c0_i32, %c0_i32_0 : i32, i32
  }
  func.func @transform_5(%arg0: i32) -> (i32, i32) {
    %c0_i32 = arith.constant 0 : i32
    %c0_i32_0 = arith.constant 0 : i32
    %c0_i32_1 = arith.constant 0 : i32
    return %c0_i32, %c0_i32_0 : i32, i32
  }
  func.func @transform_6(%arg0: i32) -> (i32, i32) {
    %c0_i32 = arith.constant 0 : i32
    %c0_i32_0 = arith.constant 0 : i32
    %c0_i32_1 = arith.constant 0 : i32
    return %c0_i32, %c0_i32_0 : i32, i32
  }
  func.func @transform_7(%arg0: i32) -> (i32, i32) {
    %c0_i32 = arith.constant 0 : i32
    %c0_i32_0 = arith.constant 0 : i32
    return %arg0, %c0_i32 : i32, i32
  }
}

</mosaic_0001>

<llo_original>
// kernel: dqn_forward.1
$region0: #{dqn_forward.1}
  #allocation0 [shape = 'u32[]', space=smem, size = 0x4, offset = 0x4, fixed_abs, tag = 'smem constant byte address 0x4 - core index']
  #allocation1 [shape = 'u32[144,128]{1,0:T(1,128)}', space=vmem, size = 0x12000, scoped, tag = 'internal scratch']
  %s0 = inlined_call_operand.vmem [shape: f32[8,41], index: 0, kind: input, shape index: {}]
  %s1 = inlined_call_operand.hbm [shape: f32[41,128], index: 1, kind: input, shape index: {}]
  %s2 = inlined_call_operand.vmem [shape: f32[1,128], index: 2, kind: input, shape index: {}]
  %s3 = inlined_call_operand.vmem [shape: f32[128,128], index: 3, kind: input, shape index: {}]
  %s4 = inlined_call_operand.vmem [shape: f32[1,128], index: 4, kind: input, shape index: {}]
  %s5 = inlined_call_operand.vmem [shape: f32[128,20], index: 5, kind: input, shape index: {}]
  %s6 = inlined_call_operand.vmem [shape: f32[1,20], index: 6, kind: input, shape index: {}]
  %s7 = inlined_call_operand.hbm [shape: f32[8,20], index: 7, kind: output, shape index: {}]
  %s8 = sld [smem:[#allocation0]]
  $region42: #{dqn_forward.1} parent=0
    _
  %s10 = ssub.s32 1, %s8
  %s11 = scalar_select 0, %s10, %s8
  $region1: #{dqn_forward.1} parent=0
    #allocation2 [shape = 'u8[24576]{0}', space=vmem, size = 0x6000, scoped, tag = 'input window, operand 1, single buffered']
    #allocation3 [shape = 's32[1]{0}', space=sflag, size = 0x4, scoped, tag = 'scoped memory for dqn_forward.1']
    #allocation4 [shape = 's32[1]{0}', space=sflag, size = 0x4, scoped, tag = 'scoped memory for dqn_forward.1']
    #allocation5 [shape = 'u8[4096]{0}', space=vmem, size = 0x1000, scoped, tag = 'output window, operand 0, single buffered']
    %12 = vsyncpa [#allocation3], 0
    %13 = vsyncpa [#allocation4], 0
    // Predicated region
    $region2: #{dqn_forward.1} parent=1 // pred_check
      _
    $region3: #{dqn_forward.1} parent=1 // pred_check_branch
      %15 = sbr.rel (0) target = $region5
    $region4: #{dqn_forward.1} parent=1 // pred_region
      _
    $region5: #{dqn_forward.1} parent=1 // pred_fallthru
      _
    // Predicated region
    $region6: #{dqn_forward.1} parent=1 // pred_check
      _
    $region7: #{dqn_forward.1} parent=1 // pred_check_branch
      %17 = sbr.rel (0) target = $region9
    $region8: #{dqn_forward.1} parent=1 // pred_region
      %s19 = ssub.s32 768, 768
      %20 = vsyncadd [#allocation3], %s19
      %s21 = sshll.u32 [#allocation2], 4
      %s22 = int_to_ptr.vmem [resolvable:$true] %s21
      %27 = dma.hbm_to_vmem [thread:$0]  %s1, 768, %s22, [#allocation3], 128, 128, 8
    $region9: #{dqn_forward.1} parent=1 // pred_fallthru
      _
    // Predicated region
    $region10: #{dqn_forward.1} parent=1 // pred_check
      _
    $region11: #{dqn_forward.1} parent=1 // pred_check_branch
      %29 = sbr.rel (0) target = $region13
    $region12: #{dqn_forward.1} parent=1 // pred_region
      _
    $region13: #{dqn_forward.1} parent=1 // pred_fallthru
      _
    // Predicated region
    $region14: #{dqn_forward.1} parent=1 // pred_check
      _
    $region15: #{dqn_forward.1} parent=1 // pred_check_branch
      %31 = sbr.rel (0) target = $region17
    $region16: #{dqn_forward.1} parent=1 // pred_region
      _
    $region17: #{dqn_forward.1} parent=1 // pred_fallthru
      _
    // Predicated region
    $region18: #{dqn_forward.1} parent=1 // pred_check
      _
    $region19: #{dqn_forward.1} parent=1 // pred_check_branch
      %33 = sbr.rel (0) target = $region21
    $region20: #{dqn_forward.1} parent=1 // pred_region
      _
    $region21: #{dqn_forward.1} parent=1 // pred_fallthru
      _
    // Predicated region
    $region22: #{dqn_forward.1} parent=1 // pred_check
      _
    $region23: #{dqn_forward.1} parent=1 // pred_check_branch
      %35 = sbr.rel (0) target = $region25
    $region24: #{dqn_forward.1} parent=1 // pred_region
      _
    $region25: #{dqn_forward.1} parent=1 // pred_fallthru
      _
    // Predicated region
    $region26: #{dqn_forward.1} parent=1 // pred_check
      _
    $region27: #{dqn_forward.1} parent=1 // pred_check_branch
      %37 = sbr.rel (0) target = $region29
    $region28: #{dqn_forward.1} parent=1 // pred_region
      _
    $region29: #{dqn_forward.1} parent=1 // pred_fallthru
      _
    // Predicated region
    $region30: #{dqn_forward.1} parent=1 // pred_check
      _
    $region31: #{dqn_forward.1} parent=1 // pred_check_branch
      %39 = sbr.rel (0) target = $region33
    $region32: #{dqn_forward.1} parent=1 // pred_region
      %40 = dma.done [#allocation3], 768
    $region33: #{dqn_forward.1} parent=1 // pred_fallthru
      _
    %v41 = vld [vmem:[%s0] sm:$0xff]
    %v42 = vld [vmem:[#allocation2] sm:$0xff]
    %v43 = vld [vmem:[#allocation2 + $0x8] sm:$0xff]
    %v44 = vld [vmem:[#allocation2 + $0x10] sm:$0xff]
    %v45 = vld [vmem:[#allocation2 + $0x18] sm:$0xff]
    %v46 = vld [vmem:[#allocation2 + $0x20] sm:$0xff]
    %v47 = vld [vmem:[#allocation2 + $0x28] sm:$0x1]
    %v48 = vld [vmem:[%s2] sm:$0x1]
    %v50 = vlaneseq
    %v51 = vshrl.u32 %v50, 7
    %v52 = vsub.s32 0, %v51
    %v53 = vrot.slane %v48, %v52
    %vm55 = vcmask 334848
    %v57 = vsel %vm55, %v41, 0
    %vm59 = vcmask 1040384
    %v61 = vsel %vm59, %v47, 0
    %63 = vmatprep.subr.mxu0 0.0
    %64 = vmatpush1.msra.mxu0 %v42
    %65 = vmatprep.subr.mxu0 0.0
    %66 = vmatpush1.msra.mxu0 %v43
    %67 = vmatprep.subr.mxu0 0.0
    %68 = vmatpush1.msra.mxu0 %v44
    %69 = vmatprep.subr.mxu0 0.0
    %70 = vmatpush1.msra.mxu0 %v45
    %71 = vmatprep.subr.mxu0 0.0
    %72 = vmatpush1.msra.mxu0 %v46
    %73 = vmatprep.subr.mxu0 0.0
    %74 = vmatpush1.msra.mxu0 %v61
    %75 = vmatprep.subr.mxu0 0.0
    %76 = vmatpush1.msra.mxu0 0.0
    %77 = vmatprep.subr.mxu0 0.0
    %78 = vmatpush1.msra.mxu0 0.0
    %79 = vmatprep.subr.mxu0 0.0
    %80 = vmatpush1.msra.mxu0 0.0
    %81 = vmatprep.subr.mxu0 0.0
    %82 = vmatpush1.msra.mxu0 0.0
    %83 = vmatprep.subr.mxu0 0.0
    %84 = vmatpush1.msra.mxu0 0.0
    %85 = vmatprep.subr.mxu0 0.0
    %86 = vmatpush1.msra.mxu0 0.0
    %87 = vmatprep.subr.mxu0 0.0
    %88 = vmatpush1.msra.mxu0 0.0
    %89 = vmatprep.subr.mxu0 0.0
    %90 = vmatpush1.msra.mxu0 0.0
    %91 = vmatprep.subr.mxu0 0.0
    %92 = vmatpush1.msra.mxu0 0.0
    %93 = vmatprep.subr.mxu0 0.0
    %94 = vmatpush1.msra.mxu0 0.0
    %95 = vmatprep.subr.mxu0 0.0
    %96 = vmatpush1.msra.mxu0 0.0
    %97 = vmatprep.subr.mxu0 0.0
    %98 = vmatpush1.msra.mxu0 0.0
    %99 = vmatprep.subr.mxu0 0.0
    %100 = vmatpush1.msra.mxu0 0.0
    %101 = vmatprep.subr.mxu0 0.0
    %102 = vmatpush1.msra.mxu0 0.0
    %103 = vmatprep.subr.mxu0 0.0
    %104 = vmatpush1.msra.mxu0 0.0
    %105 = vmatprep.subr.mxu0 0.0
    %106 = vmatpush1.msra.mxu0 0.0
    %107 = vmatprep.subr.mxu0 0.0
    %108 = vmatpush1.msra.mxu0 0.0
    %109 = vmatprep.subr.mxu0 0.0
    %110 = vmatpush1.msra.mxu0 0.0
    %111 = vmatprep.subr.mxu0 0.0
    %112 = vmatpush1.msra.mxu0 0.0
    %113 = vmatprep.subr.mxu0 0.0
    %114 = vmatpush1.msra.mxu0 0.0
    %115 = vmatprep.subr.mxu0 0.0
    %116 = vmatpush1.msra.mxu0 0.0
    %117 = vmatprep.subr.mxu0 0.0
    %118 = vmatpush1.msra.mxu0 0.0
    %119 = vmatprep.subr.mxu0 0.0
    %120 = vmatpush1.msra.mxu0 0.0
    %121 = vmatprep.subr.mxu0 0.0
    %122 = vmatpush1.msra.mxu0 0.0
    %123 = vmatprep.subr.mxu0 0.0
    %124 = vmatpush1.msra.mxu0 0.0
    %125 = vmatprep.subr.mxu0 0.0
    %126 = vmatpush1.msra.mxu0 0.0
    %127 = vmatprep.mubr.f32.mxu0 0.0
    %128 = vmatmul.mubr.f32.gmra.mrb[0].mxu0 %v57
    %v129 = vpop.f32.mrb[0].mxu0
    %v130 = vadd.f32 %v53, %v129
    %v131 = vpop.f32.mrb[0].mxu0
    %132 = vdwg.mxu0
    %v133 = vmax.f32 %v130, 0.0
    %v134 = vld [vmem:[%s3] sm:$0xff]
    %v135 = vld [vmem:[%s3 + $0x8] sm:$0xff]
    %v136 = vld [vmem:[%s3 + $0x10] sm:$0xff]
    %v137 = vld [vmem:[%s3 + $0x18] sm:$0xff]
    %v138 = vld [vmem:[%s3 + $0x20] sm:$0xff]
    %v139 = vld [vmem:[%s3 + $0x28] sm:$0xff]
    %v140 = vld [vmem:[%s3 + $0x30] sm:$0xff]
    %v141 = vld [vmem:[%s3 + $0x38] sm:$0xff]
    %v142 = vld [vmem:[%s3 + $0x40] sm:$0xff]
    %v143 = vld [vmem:[%s3 + $0x48] sm:$0xff]
    %v144 = vld [vmem:[%s3 + $0x50] sm:$0xff]
    %v145 = vld [vmem:[%s3 + $0x58] sm:$0xff]
    %v146 = vld [vmem:[%s3 + $0x60] sm:$0xff]
    %v147 = vld [vmem:[%s3 + $0x68] sm:$0xff]
    %v148 = vld [vmem:[%s3 + $0x70] sm:$0xff]
    %v149 = vld [vmem:[%s3 + $0x78] sm:$0xff]
    %v150 = vld [vmem:[%s4] sm:$0x1]
    %v152 = vlaneseq
    %v153 = vshrl.u32 %v152, 7
    %v154 = vsub.s32 0, %v153
    %v155 = vrot.slane %v150, %v154
    %157 = vmatprep.subr.mxu0 0.0
    %158 = vmatpush1.msra.mxu0 %v134
    %159 = vmatprep.subr.mxu0 0.0
    %160 = vmatpush1.msra.mxu0 %v135
    %161 = vmatprep.subr.mxu0 0.0
    %162 = vmatpush1.msra.mxu0 %v136
    %163 = vmatprep.subr.mxu0 0.0
    %164 = vmatpush1.msra.mxu0 %v137
    %165 = vmatprep.subr.mxu0 0.0
    %166 = vmatpush1.msra.mxu0 %v138
    %167 = vmatprep.subr.mxu0 0.0
    %168 = vmatpush1.msra.mxu0 %v139
    %169 = vmatprep.subr.mxu0 0.0
    %170 = vmatpush1.msra.mxu0 %v140
    %171 = vmatprep.subr.mxu0 0.0
    %172 = vmatpush1.msra.mxu0 %v141
    %173 = vmatprep.subr.mxu0 0.0
    %174 = vmatpush1.msra.mxu0 %v142
    %175 = vmatprep.subr.mxu0 0.0
    %176 = vmatpush1.msra.mxu0 %v143
    %177 = vmatprep.subr.mxu0 0.0
    %178 = vmatpush1.msra.mxu0 %v144
    %179 = vmatprep.subr.mxu0 0.0
    %180 = vmatpush1.msra.mxu0 %v145
    %181 = vmatprep.subr.mxu0 0.0
    %182 = vmatpush1.msra.mxu0 %v146
    %183 = vmatprep.subr.mxu0 0.0
    %184 = vmatpush1.msra.mxu0 %v147
    %185 = vmatprep.subr.mxu0 0.0
    %186 = vmatpush1.msra.mxu0 %v148
    %187 = vmatprep.subr.mxu0 0.0
    %188 = vmatpush1.msra.mxu0 %v149
    %189 = vmatprep.subr.mxu0 0.0
    %190 = vmatpush1.msra.mxu0 0.0
    %191 = vmatprep.subr.mxu0 0.0
    %192 = vmatpush1.msra.mxu0 0.0
    %193 = vmatprep.subr.mxu0 0.0
    %194 = vmatpush1.msra.mxu0 0.0
    %195 = vmatprep.subr.mxu0 0.0
    %196 = vmatpush1.msra.mxu0 0.0
    %197 = vmatprep.subr.mxu0 0.0
    %198 = vmatpush1.msra.mxu0 0.0
    %199 = vmatprep.subr.mxu0 0.0
    %200 = vmatpush1.msra.mxu0 0.0
    %201 = vmatprep.subr.mxu0 0.0
    %202 = vmatpush1.msra.mxu0 0.0
    %203 = vmatprep.subr.mxu0 0.0
    %204 = vmatpush1.msra.mxu0 0.0
    %205 = vmatprep.subr.mxu0 0.0
    %206 = vmatpush1.msra.mxu0 0.0
    %207 = vmatprep.subr.mxu0 0.0
    %208 = vmatpush1.msra.mxu0 0.0
    %209 = vmatprep.subr.mxu0 0.0
    %210 = vmatpush1.msra.mxu0 0.0
    %211 = vmatprep.subr.mxu0 0.0
    %212 = vmatpush1.msra.mxu0 0.0
    %213 = vmatprep.subr.mxu0 0.0
    %214 = vmatpush1.msra.mxu0 0.0
    %215 = vmatprep.subr.mxu0 0.0
    %216 = vmatpush1.msra.mxu0 0.0
    %217 = vmatprep.subr.mxu0 0.0
    %218 = vmatpush1.msra.mxu0 0.0
    %219 = vmatprep.subr.mxu0 0.0
    %220 = vmatpush1.msra.mxu0 0.0
    %221 = vmatprep.mubr.f32.mxu0 0.0
    %222 = vmatmul.mubr.f32.gmra.mrb[0].mxu0 %v133
    %v223 = vpop.f32.mrb[0].mxu0
    %v224 = vadd.f32 %v155, %v223
    %v225 = vpop.f32.mrb[0].mxu0
    %226 = vdwg.mxu0
    %v227 = vmax.f32 %v224, 0.0
    %v228 = vld [vmem:[%s5] sm:$0xff]
    %v229 = vld [vmem:[%s5 + $0x8] sm:$0xff]
    %v230 = vld [vmem:[%s5 + $0x10] sm:$0xff]
    %v231 = vld [vmem:[%s5 + $0x18] sm:$0xff]
    %v232 = vld [vmem:[%s5 + $0x20] sm:$0xff]
    %v233 = vld [vmem:[%s5 + $0x28] sm:$0xff]
    %v234 = vld [vmem:[%s5 + $0x30] sm:$0xff]
    %v235 = vld [vmem:[%s5 + $0x38] sm:$0xff]
    %v236 = vld [vmem:[%s5 + $0x40] sm:$0xff]
    %v237 = vld [vmem:[%s5 + $0x48] sm:$0xff]
    %v238 = vld [vmem:[%s5 + $0x50] sm:$0xff]
    %v239 = vld [vmem:[%s5 + $0x58] sm:$0xff]
    %v240 = vld [vmem:[%s5 + $0x60] sm:$0xff]
    %v241 = vld [vmem:[%s5 + $0x68] sm:$0xff]
    %v242 = vld [vmem:[%s5 + $0x70] sm:$0xff]
    %v243 = vld [vmem:[%s5 + $0x78] sm:$0xff]
    %v244 = vld [vmem:[%s6] sm:$0x1]
    %v246 = vlaneseq
    %v247 = vshrl.u32 %v246, 7
    %v248 = vsub.s32 0, %v247
    %v249 = vrot.slane %v244, %v248
    %251 = vmatprep.subr.mxu0 0.0
    %252 = vmatpush1.msra.mxu0 %v228
    %253 = vmatprep.subr.mxu0 0.0
    %254 = vmatpush1.msra.mxu0 %v229
    %255 = vmatprep.subr.mxu0 0.0
    %256 = vmatpush1.msra.mxu0 %v230
    %257 = vmatprep.subr.mxu0 0.0
    %258 = vmatpush1.msra.mxu0 %v231
    %259 = vmatprep.subr.mxu0 0.0
    %260 = vmatpush1.msra.mxu0 %v232
    %261 = vmatprep.subr.mxu0 0.0
    %262 = vmatpush1.msra.mxu0 %v233
    %263 = vmatprep.subr.mxu0 0.0
    %264 = vmatpush1.msra.mxu0 %v234
    %265 = vmatprep.subr.mxu0 0.0
    %266 = vmatpush1.msra.mxu0 %v235
    %267 = vmatprep.subr.mxu0 0.0
    %268 = vmatpush1.msra.mxu0 %v236
    %269 = vmatprep.subr.mxu0 0.0
    %270 = vmatpush1.msra.mxu0 %v237
    %271 = vmatprep.subr.mxu0 0.0
    %272 = vmatpush1.msra.mxu0 %v238
    %273 = vmatprep.subr.mxu0 0.0
    %274 = vmatpush1.msra.mxu0 %v239
    %275 = vmatprep.subr.mxu0 0.0
    %276 = vmatpush1.msra.mxu0 %v240
    %277 = vmatprep.subr.mxu0 0.0
    %278 = vmatpush1.msra.mxu0 %v241
    %279 = vmatprep.subr.mxu0 0.0
    %280 = vmatpush1.msra.mxu0 %v242
    %281 = vmatprep.subr.mxu0 0.0
    %282 = vmatpush1.msra.mxu0 %v243
    %283 = vmatprep.subr.mxu0 0.0
    %284 = vmatpush1.msra.mxu0 0.0
    %285 = vmatprep.subr.mxu0 0.0
    %286 = vmatpush1.msra.mxu0 0.0
    %287 = vmatprep.subr.mxu0 0.0
    %288 = vmatpush1.msra.mxu0 0.0
    %289 = vmatprep.subr.mxu0 0.0
    %290 = vmatpush1.msra.mxu0 0.0
    %291 = vmatprep.subr.mxu0 0.0
    %292 = vmatpush1.msra.mxu0 0.0
    %293 = vmatprep.subr.mxu0 0.0
    %294 = vmatpush1.msra.mxu0 0.0
    %295 = vmatprep.subr.mxu0 0.0
    %296 = vmatpush1.msra.mxu0 0.0
    %297 = vmatprep.subr.mxu0 0.0
    %298 = vmatpush1.msra.mxu0 0.0
    %299 = vmatprep.subr.mxu0 0.0
    %300 = vmatpush1.msra.mxu0 0.0
    %301 = vmatprep.subr.mxu0 0.0
    %302 = vmatpush1.msra.mxu0 0.0
    %303 = vmatprep.subr.mxu0 0.0
    %304 = vmatpush1.msra.mxu0 0.0
    %305 = vmatprep.subr.mxu0 0.0
    %306 = vmatpush1.msra.mxu0 0.0
    %307 = vmatprep.subr.mxu0 0.0
    %308 = vmatpush1.msra.mxu0 0.0
    %309 = vmatprep.subr.mxu0 0.0
    %310 = vmatpush1.msra.mxu0 0.0
    %311 = vmatprep.subr.mxu0 0.0
    %312 = vmatpush1.msra.mxu0 0.0
    %313 = vmatprep.subr.mxu0 0.0
    %314 = vmatpush1.msra.mxu0 0.0
    %315 = vmatprep.mubr.f32.mxu0 0.0
    %316 = vmatmul.mubr.f32.gmra.mrb[0].mxu0 %v227
    %v317 = vpop.f32.mrb[0].mxu0
    %v318 = vadd.f32 %v249, %v317
    %v319 = vpop.f32.mrb[0].mxu0
    %320 = vdwg.mxu0
    %v321 = vmax.f32 %v318, 0.0
    %v322 = vsub.f32 0.0, %v321
    %vm323 = vcmask 162816
    %324 = vst.msk [vmem:[#allocation5] sm:$0xff] %vm323, %v322
    // Predicated region
    $region34: #{dqn_forward.1} parent=1 // pred_check
      _
    $region35: #{dqn_forward.1} parent=1 // pred_check_branch
      %326 = sbr.rel (0) target = $region37
    $region36: #{dqn_forward.1} parent=1 // pred_region
      %s328 = ssub.s32 128, 128
      %329 = vsyncadd [#allocation4], %s328
      %s331 = sshll.u32 [#allocation5], 4
      %s332 = int_to_ptr.vmem [resolvable:$true] %s331
      %334 = dma.vmem_to_hbm [thread:$0]  %s332, 128, %s7, [#allocation4]
    $region37: #{dqn_forward.1} parent=1 // pred_fallthru
      _
    // Predicated region
    $region38: #{dqn_forward.1} parent=1 // pred_check
      _
    $region39: #{dqn_forward.1} parent=1 // pred_check_branch
      %336 = sbr.rel (0) target = $region41
    $region40: #{dqn_forward.1} parent=1 // pred_region
      %337 = dma.done [#allocation4], 128
    $region41: #{dqn_forward.1} parent=1 // pred_fallthru
      _
    %338 = vsyncpa [#allocation3], 1
    %339 = vsyncpa [#allocation4], 1

</llo_original>
